<compile_context>
chip_gen: v6e
topology: v6e:2x2x1
jax: 0.10.0
libtpu: 0.0.40
codegen_flags: <defaults>
</compile_context>

<pallas_src>
import functools

import jax
import jax.numpy as jnp
import numpy as np
from jax.experimental import pallas as pl
from jax.experimental.pallas import tpu as pltpu


def _mha_kernel(*refs, n_head, d_k, d_v, ln_eps, has_fc, return_attn, compute_dtype):
    """One grid point = one (batch, q_tile). All heads handled inside the body."""
    q_ref, k_ref, v_ref, wq_ref, wk_ref, wv_ref = refs[:6]
    pos = 6
    wfc_ref = None
    if has_fc:
        wfc_ref = refs[pos]; pos += 1
    gamma_ref = refs[pos]; beta_ref = refs[pos + 1]; pos += 2
    out_ref = refs[pos]; pos += 1
    attn_ref = None
    if return_attn:
        attn_ref = refs[pos]; pos += 1
    kproj_ref = refs[pos]; vproj_ref = refs[pos + 1]

    qi = pl.program_id(1)

    # ---- K/V projections: computed once per batch (qi == 0), cached head-major in VMEM.
    @pl.when(qi == 0)
    def _():
        k2d = k_ref[0]                                                  # (len_k, d_model)
        v2d = v_ref[0]
        kall = jnp.dot(k2d, wk_ref[...], preferred_element_type=jnp.float32)  # (lk, H*dk)
        vall = jnp.dot(v2d, wv_ref[...], preferred_element_type=jnp.float32)  # (lk, H*dv)
        for h in range(n_head):  # static loop; runs once per batch, not per q-tile
            kproj_ref[h] = kall[:, h * d_k:(h + 1) * d_k].astype(kproj_ref.dtype)
            vproj_ref[h] = vall[:, h * d_v:(h + 1) * d_v].astype(vproj_ref.dtype)

    # ---- Q projection for this q-tile (1/temperature pre-folded into wq on the host).
    q_tile = q_ref[0]                                                   # (tq, d_model)
    q_res = q_tile.astype(jnp.float32)                                  # f32 residual
    qall = jnp.dot(q_tile.astype(compute_dtype), wq_ref[...],
                   preferred_element_type=jnp.float32)                  # (tq, H*dk) f32
    qall = qall.astype(compute_dtype)
    qh = jnp.stack([qall[:, h * d_k:(h + 1) * d_k] for h in range(n_head)],
                   axis=0)                                              # (H, tq, dk)

    kh = kproj_ref[...]                                                 # (H, len_k, dk)
    vh = vproj_ref[...]                                                 # (H, len_k, dv)

    # ---- Head-batched attention: one dot_general for scores, one for A@V.
    scores = jax.lax.dot_general(
        qh, kh, (((2,), (2,)), ((0,), (0,))),
        preferred_element_type=jnp.float32)                             # (H, tq, len_k) f32

    m = jnp.max(scores, axis=-1, keepdims=True)
    e = jnp.exp(scores - m)
    l = jnp.sum(e, axis=-1, keepdims=True)
    attn_f32 = e * pl.reciprocal(l, approx=True)                        # EUP reciprocal
    attn_c = attn_f32.astype(compute_dtype)                             # single cast, reused

    if return_attn:
        src = attn_c if attn_ref.dtype == attn_c.dtype else attn_f32
        attn_ref[:, 0] = src.astype(attn_ref.dtype)                     # one store, all heads

    av = jax.lax.dot_general(
        attn_c, vh, (((2,), (1,)), ((0,), (0,))),
        preferred_element_type=jnp.float32)                             # (H, tq, dv) f32

    if has_fc:
        concat = jnp.concatenate([av[h] for h in range(n_head)], axis=-1)   # (tq, H*dv)
        proj = jnp.dot(concat.astype(compute_dtype), wfc_ref[...],
                       preferred_element_type=jnp.float32)              # (tq, d_model)
    else:
        proj = av[0]                                                    # n_head == 1: no fc

    # ---- Residual + LayerNorm(d_model), f32, single-pass mean/variance.
    y = proj + q_res
    inv_d = 1.0 / y.shape[-1]
    s1 = jnp.sum(y, axis=-1, keepdims=True)
    s2 = jnp.sum(y * y, axis=-1, keepdims=True)
    mu = s1 * inv_d
    var = jnp.maximum(s2 * inv_d - mu * mu, 0.0)
    yn = (y - mu) * jax.lax.rsqrt(var + ln_eps)
    out_ref[0] = (yn * gamma_ref[...] + beta_ref[...]).astype(out_ref.dtype)


def multi_head_attention_pallas(q, k, v, params, *, n_head, d_k, d_v,
                                compute_dtype=jnp.bfloat16,
                                attn_dtype=jnp.bfloat16,
                                out_dtype=None,
                                return_attn=True):
    """Runs the fused MHA kernel. Returns (output, attn) matching the torch module.

    compute_dtype: dtype of matmul operands (bf16; accumulation/softmax/LN always f32).
    attn_dtype:    dtype of the attention-probability writeback (bf16 halves HBM traffic).
    return_attn:   set False to skip the (H*B*Lq*Lk) writeback when attn is unused.
    """
    sz_b, len_q, d_model = q.shape
    _, len_k, _ = k.shape
    has_fc = n_head > 1
    if not has_fc:
        # torch module with n_head==1 has no fc; residual add forces d_v == d_model.
        assert d_v == d_model
    out_dtype = q.dtype if out_dtype is None else out_dtype

    # ---- q-tile selection (+ zero-padding to a fixed tile for long / ragged len_q).
    if len_q > 512:
        tq = next((c for c in (512, 256, 128) if len_q % c == 0), 128)
    else:
        tq = len_q
    n_qt = -(-len_q // tq)
    # v7x megacore: guarantee >= 2 independent grid points when possible.
    if sz_b == 1 and n_qt == 1 and len_q >= 16 and len_q % 16 == 0:
        tq = len_q // 2
        n_qt = 2
    len_q_pad = n_qt * tq
    q_in = q if len_q_pad == len_q else jnp.pad(q, ((0, 0), (0, len_q_pad - len_q), (0, 0)))

    # ---- Host-side weight rearrangement (once). torch Linear: y = x @ W.T, W = (out, in).
    inv_temperature = float(1.0 / np.power(d_k, 0.5))
    wq = (params["w_qs"].T.astype(jnp.float32) * inv_temperature).astype(compute_dtype)
    wk = params["w_ks"].T.astype(compute_dtype)            # (d_model, n_head*d_k)
    wv = params["w_vs"].T.astype(compute_dtype)            # (d_model, n_head*d_v)
    gamma = params["ln_gamma"].reshape(1, d_model).astype(jnp.float32)
    beta = params["ln_beta"].reshape(1, d_model).astype(jnp.float32)
    kc = k.astype(compute_dtype)
    vc = v.astype(compute_dtype)

    kernel = functools.partial(
        _mha_kernel, n_head=n_head, d_k=d_k, d_v=d_v, ln_eps=1e-5,
        has_fc=has_fc, return_attn=return_attn, compute_dtype=compute_dtype)

    in_specs = [
        pl.BlockSpec((1, tq, d_model), lambda b, qi: (b, qi, 0)),      # q (per-batch, per-tile)
        pl.BlockSpec((1, len_k, d_model), lambda b, qi: (b, 0, 0)),    # k (resident per batch)
        pl.BlockSpec((1, len_k, d_model), lambda b, qi: (b, 0, 0)),    # v
        pl.BlockSpec((d_model, n_head * d_k), lambda b, qi: (0, 0)),   # wq (fetched once)
        pl.BlockSpec((d_model, n_head * d_k), lambda b, qi: (0, 0)),   # wk
        pl.BlockSpec((d_model, n_head * d_v), lambda b, qi: (0, 0)),   # wv
    ]
    args = [q_in, kc, vc, wq, wk, wv]
    if has_fc:
        wfc = params["fc"].T.astype(compute_dtype)                     # (n_head*d_v, d_model)
        in_specs.append(pl.BlockSpec((n_head * d_v, d_model), lambda b, qi: (0, 0)))
        args.append(wfc)
    in_specs += [
        pl.BlockSpec((1, d_model), lambda b, qi: (0, 0)),              # gamma
        pl.BlockSpec((1, d_model), lambda b, qi: (0, 0)),              # beta
    ]
    args += [gamma, beta]

    out_shapes = [jax.ShapeDtypeStruct((sz_b, len_q_pad, d_model), out_dtype)]
    out_specs = [pl.BlockSpec((1, tq, d_model), lambda b, qi: (b, qi, 0))]
    if return_attn:
        out_shapes.append(jax.ShapeDtypeStruct((n_head, sz_b, len_q_pad, len_k), attn_dtype))
        out_specs.append(pl.BlockSpec((n_head, 1, tq, len_k), lambda b, qi: (0, b, qi, 0)))

    scratch_shapes = [
        pltpu.VMEM((n_head, len_k, d_k), compute_dtype),   # cached K projection (head-major)
        pltpu.VMEM((n_head, len_k, d_v), compute_dtype),   # cached V projection
    ]

    # ---- VMEM budget (double-buffered blocks + resident weights + scratch + f32 temps).
    csz = jnp.dtype(compute_dtype).itemsize
    est = 0
    est += 2 * tq * d_model * jnp.dtype(q_in.dtype).itemsize
    est += 2 * 2 * len_k * d_model * csz
    est += 2 * tq * d_model * jnp.dtype(out_dtype).itemsize
    if return_attn:
        est += 2 * n_head * tq * len_k * jnp.dtype(attn_dtype).itemsize
    est += 2 * d_model * (2 * n_head * d_k + n_head * d_v) * csz
    if has_fc:
        est += 2 * n_head * d_v * d_model * csz
    est += 2 * 2 * d_model * 4
    est += n_head * len_k * (d_k + d_v) * csz
    est += 4 * n_head * tq * len_k * 4                     # f32 scores / exp temporaries
    vmem_limit = int(min(max(est * 3 // 2 + (4 << 20), 32 << 20), 64 << 20))

    results = pl.pallas_call(
        kernel,
        out_shape=tuple(out_shapes),
        grid_spec=pltpu.PrefetchScalarGridSpec(
            num_scalar_prefetch=0,
            grid=(sz_b, n_qt),
            in_specs=in_specs,
            out_specs=out_specs,
            scratch_shapes=scratch_shapes,
        ),
        compiler_params=pltpu.CompilerParams(
            dimension_semantics=("parallel", "arbitrary"),
            vmem_limit_bytes=vmem_limit),
    )(*args)

    if return_attn:
        out_p, attn_p = results
        attn = attn_p[:, :, :len_q, :].reshape(n_head * sz_b, len_q, len_k)
    else:
        (out_p,) = results
        attn = None
    out = out_p[:, :len_q, :]
    return out, attn


def _reference(q, k, v, params, *, n_head, d_k, d_v):
    """Pure-JAX f32 replica of the torch forward (eval mode, attn_mask=None)."""
    sz_b, len_q, d_model = q.shape
    _, len_k, _ = k.shape
    residual = q
    qp = (q @ params["w_qs"].T).reshape(sz_b, len_q, n_head, d_k)
    kp = (k @ params["w_ks"].T).reshape(sz_b, len_k, n_head, d_k)
    vp = (v @ params["w_vs"].T).reshape(sz_b, len_k, n_head, d_v)
    qp = qp.transpose(2, 0, 1, 3).reshape(-1, len_q, d_k)
    kp = kp.transpose(2, 0, 1, 3).reshape(-1, len_k, d_k)
    vp = vp.transpose(2, 0, 1, 3).reshape(-1, len_k, d_v)
    attn = jnp.einsum("bqd,bkd->bqk", qp, kp) / np.power(d_k, 0.5)
    attn = jax.nn.softmax(attn, axis=2)
    out = jnp.einsum("bqk,bkd->bqd", attn, vp)
    out = out.reshape(n_head, sz_b, len_q, d_v).transpose(1, 2, 0, 3).reshape(sz_b, len_q, -1)
    if n_head > 1:
        out = out @ params["fc"].T
    y = out + residual
    mu = jnp.mean(y, axis=-1, keepdims=True)
    var = jnp.mean((y - mu) ** 2, axis=-1, keepdims=True)
    y = (y - mu) / jnp.sqrt(var + 1e-5) * params["ln_gamma"] + params["ln_beta"]
    return y, attn


if __name__ == "__main__":
    # Small shapes consistent with the module.
    sz_b, seq, d_model = 2, 8, 32
    n_head, d_k, d_v = 2, 8, 8

    key = jax.random.PRNGKey(0)
    k_q, k_k, k_v, k_wq, k_wk, k_wv, k_fc = jax.random.split(key, 7)

    q = jax.random.normal(k_q, (sz_b, seq, d_model), jnp.float32)
    k = jax.random.normal(k_k, (sz_b, seq, d_model), jnp.float32)
    v = jax.random.normal(k_v, (sz_b, seq, d_model), jnp.float32)

    std_qk = float(np.sqrt(2.0 / (d_model + d_k)))
    std_v = float(np.sqrt(2.0 / (d_model + d_v)))
    xavier_std = float(np.sqrt(2.0 / (d_model + n_head * d_v)))  # xavier_normal_ gain=1
    params = {
        "w_qs": std_qk * jax.random.normal(k_wq, (n_head * d_k, d_model), jnp.float32),
        "w_ks": std_qk * jax.random.normal(k_wk, (n_head * d_k, d_model), jnp.float32),
        "w_vs": std_v * jax.random.normal(k_wv, (n_head * d_v, d_model), jnp.float32),
        "fc": xavier_std * jax.random.normal(k_fc, (d_model, n_head * d_v), jnp.float32),
        "ln_gamma": jnp.ones((d_model,), jnp.float32),
        "ln_beta": jnp.zeros((d_model,), jnp.float32),
    }

    out, attn = multi_head_attention_pallas(
        q, k, v, params, n_head=n_head, d_k=d_k, d_v=d_v,
        compute_dtype=jnp.bfloat16, attn_dtype=jnp.bfloat16)
    out, attn = jax.block_until_ready((out, attn))

    ref_out, ref_attn = _reference(q, k, v, params, n_head=n_head, d_k=d_k, d_v=d_v)
    # bf16 matmul operands and bf16 attn writeback (f32 accumulation / softmax / LayerNorm)
    # -> relaxed tolerances.
    np.testing.assert_allclose(np.asarray(out, np.float32), np.asarray(ref_out),
                               atol=5e-2, rtol=5e-2)
    np.testing.assert_allclose(np.asarray(attn, np.float32), np.asarray(ref_attn),
                               atol=5e-2, rtol=5e-2)

    print("KERNEL_OK")
</pallas_src>

<mosaic_0001>
module attributes {stable_mosaic.version = 11 : i64} {
  func.func @_mha_kernel(%arg0: i32, %arg1: i32, %arg2: memref<1x8x32xf32, #tpu.memory_space<vmem>>, %arg3: memref<1x8x32xbf16, #tpu.memory_space<vmem>>, %arg4: memref<1x8x32xbf16, #tpu.memory_space<vmem>>, %arg5: memref<32x16xbf16, #tpu.memory_space<vmem>>, %arg6: memref<32x16xbf16, #tpu.memory_space<vmem>>, %arg7: memref<32x16xbf16, #tpu.memory_space<vmem>>, %arg8: memref<16x32xbf16, #tpu.memory_space<vmem>>, %arg9: memref<1x32xf32, #tpu.memory_space<vmem>>, %arg10: memref<1x32xf32, #tpu.memory_space<vmem>>, %arg11: memref<1x8x32xf32, #tpu.memory_space<vmem>>, %arg12: memref<2x1x8x8xbf16, #tpu.memory_space<vmem>>, %arg13: memref<2x8x8xbf16, #tpu.memory_space<vmem>>, %arg14: memref<2x8x8xbf16, #tpu.memory_space<vmem>>) attributes {dimension_semantics = [#tpu.dimension_semantics<parallel>, #tpu.dimension_semantics<arbitrary>], iteration_bounds = array<i64: 2, 1>, scalar_prefetch = 0 : i64, scratch_operands = 2 : i64, tpu.core_type = #tpu.core_type<tc>, window_params = [{transform_indices = @transform_0, window_bounds = array<i64: 1, 8, 32>}, {transform_indices = @transform_1, window_bounds = array<i64: 1, 8, 32>}, {transform_indices = @transform_2, window_bounds = array<i64: 1, 8, 32>}, {pipeline_mode = #tpu.pipeline_mode<synchronous>, transform_indices = @transform_3, window_bounds = array<i64: 32, 16>}, {pipeline_mode = #tpu.pipeline_mode<synchronous>, transform_indices = @transform_4, window_bounds = array<i64: 32, 16>}, {pipeline_mode = #tpu.pipeline_mode<synchronous>, transform_indices = @transform_5, window_bounds = array<i64: 32, 16>}, {pipeline_mode = #tpu.pipeline_mode<synchronous>, transform_indices = @transform_6, window_bounds = array<i64: 16, 32>}, {pipeline_mode = #tpu.pipeline_mode<synchronous>, transform_indices = @transform_7, window_bounds = array<i64: 1, 32>}, {pipeline_mode = #tpu.pipeline_mode<synchronous>, transform_indices = @transform_8, window_bounds = array<i64: 1, 32>}, {transform_indices = @transform_9, window_bounds = array<i64: 1, 8, 32>}, {transform_indices = @transform_10, window_bounds = array<i64: 2, 1, 8, 8>}]} {
    %c0_i32 = arith.constant 0 : i32
    %0 = arith.cmpi eq, %arg1, %c0_i32 : i32
    %1 = arith.extui %0 : i1 to i32
    %c0_i32_0 = arith.constant 0 : i32
    %2 = arith.cmpi ne, %1, %c0_i32_0 : i32
    scf.if %2 {
      %c0_35 = arith.constant 0 : index
      %c0_36 = arith.constant 0 : index
      %c0_37 = arith.constant 0 : index
      %70 = vector.load %arg3[%c0_35, %c0_36, %c0_37] : memref<1x8x32xbf16, #tpu.memory_space<vmem>>, vector<1x8x32xbf16>
      %71 = vector.shape_cast %70 : vector<1x8x32xbf16> to vector<8x32xbf16>
      %c0_38 = arith.constant 0 : index
      %c0_39 = arith.constant 0 : index
      %c0_40 = arith.constant 0 : index
      %72 = vector.load %arg4[%c0_38, %c0_39, %c0_40] : memref<1x8x32xbf16, #tpu.memory_space<vmem>>, vector<1x8x32xbf16>
      %73 = vector.shape_cast %72 : vector<1x8x32xbf16> to vector<8x32xbf16>
      %c0_41 = arith.constant 0 : index
      %c0_42 = arith.constant 0 : index
      %74 = vector.load %arg6[%c0_41, %c0_42] : memref<32x16xbf16, #tpu.memory_space<vmem>>, vector<32x16xbf16>
      %cst_43 = arith.constant dense<0.000000e+00> : vector<8x16xf32>
      %75 = tpu.matmul %71, %74, %cst_43 {dimension_numbers = #tpu.dot_dimension_numbers<[1], [0], [0], [1], [0, 0, 1, 1], [], []>} : vector<8x32xbf16>, vector<32x16xbf16>, vector<8x16xf32> -> vector<8x16xf32>
      %c0_44 = arith.constant 0 : index
      %c0_45 = arith.constant 0 : index
      %76 = vector.load %arg7[%c0_44, %c0_45] : memref<32x16xbf16, #tpu.memory_space<vmem>>, vector<32x16xbf16>
      %cst_46 = arith.constant dense<0.000000e+00> : vector<8x16xf32>
      %77 = tpu.matmul %73, %76, %cst_46 {dimension_numbers = #tpu.dot_dimension_numbers<[1], [0], [0], [1], [0, 0, 1, 1], [], []>} : vector<8x32xbf16>, vector<32x16xbf16>, vector<8x16xf32> -> vector<8x16xf32>
      %78 = vector.extract_strided_slice %75 {offsets = [0, 0], sizes = [8, 8], strides = [1, 1]} : vector<8x16xf32> to vector<8x8xf32>
      %79 = arith.truncf %78 : vector<8x8xf32> to vector<8x8xbf16>
      %c0_47 = arith.constant 0 : index
      %c0_48 = arith.constant 0 : index
      %c0_49 = arith.constant 0 : index
      %80 = vector.load %arg13[%c0_47, %c0_48, %c0_49] : memref<2x8x8xbf16, #tpu.memory_space<vmem>>, vector<1x8x8xbf16>
      %81 = vector.shape_cast %80 : vector<1x8x8xbf16> to vector<8x8xbf16>
      %82 = vector.shape_cast %79 : vector<8x8xbf16> to vector<1x8x8xbf16>
      tpu.vector_store %arg13[%c0_47, %c0_48, %c0_49], %82 {strides = array<i32>} : memref<2x8x8xbf16, #tpu.memory_space<vmem>>, vector<1x8x8xbf16>,
      %83 = vector.extract_strided_slice %77 {offsets = [0, 0], sizes = [8, 8], strides = [1, 1]} : vector<8x16xf32> to vector<8x8xf32>
      %84 = arith.truncf %83 : vector<8x8xf32> to vector<8x8xbf16>
      %c0_50 = arith.constant 0 : index
      %c0_51 = arith.constant 0 : index
      %c0_52 = arith.constant 0 : index
      %85 = vector.load %arg14[%c0_50, %c0_51, %c0_52] : memref<2x8x8xbf16, #tpu.memory_space<vmem>>, vector<1x8x8xbf16>
      %86 = vector.shape_cast %85 : vector<1x8x8xbf16> to vector<8x8xbf16>
      %87 = vector.shape_cast %84 : vector<8x8xbf16> to vector<1x8x8xbf16>
      tpu.vector_store %arg14[%c0_50, %c0_51, %c0_52], %87 {strides = array<i32>} : memref<2x8x8xbf16, #tpu.memory_space<vmem>>, vector<1x8x8xbf16>,
      %88 = vector.extract_strided_slice %75 {offsets = [0, 8], sizes = [8, 8], strides = [1, 1]} : vector<8x16xf32> to vector<8x8xf32>
      %89 = arith.truncf %88 : vector<8x8xf32> to vector<8x8xbf16>
      %c1 = arith.constant 1 : index
      %c0_53 = arith.constant 0 : index
      %c0_54 = arith.constant 0 : index
      %90 = vector.load %arg13[%c1, %c0_53, %c0_54] : memref<2x8x8xbf16, #tpu.memory_space<vmem>>, vector<1x8x8xbf16>
      %91 = vector.shape_cast %90 : vector<1x8x8xbf16> to vector<8x8xbf16>
      %92 = vector.shape_cast %89 : vector<8x8xbf16> to vector<1x8x8xbf16>
      tpu.vector_store %arg13[%c1, %c0_53, %c0_54], %92 {strides = array<i32>} : memref<2x8x8xbf16, #tpu.memory_space<vmem>>, vector<1x8x8xbf16>,
      %93 = vector.extract_strided_slice %77 {offsets = [0, 8], sizes = [8, 8], strides = [1, 1]} : vector<8x16xf32> to vector<8x8xf32>
      %94 = arith.truncf %93 : vector<8x8xf32> to vector<8x8xbf16>
      %c1_55 = arith.constant 1 : index
      %c0_56 = arith.constant 0 : index
      %c0_57 = arith.constant 0 : index
      %95 = vector.load %arg14[%c1_55, %c0_56, %c0_57] : memref<2x8x8xbf16, #tpu.memory_space<vmem>>, vector<1x8x8xbf16>
      %96 = vector.shape_cast %95 : vector<1x8x8xbf16> to vector<8x8xbf16>
      %97 = vector.shape_cast %94 : vector<8x8xbf16> to vector<1x8x8xbf16>
      tpu.vector_store %arg14[%c1_55, %c0_56, %c0_57], %97 {strides = array<i32>} : memref<2x8x8xbf16, #tpu.memory_space<vmem>>, vector<1x8x8xbf16>,
    } else {
    }
    %c0 = arith.constant 0 : index
    %c0_1 = arith.constant 0 : index
    %c0_2 = arith.constant 0 : index
    %3 = vector.load %arg2[%c0, %c0_1, %c0_2] : memref<1x8x32xf32, #tpu.memory_space<vmem>>, vector<1x8x32xf32>
    %4 = vector.shape_cast %3 : vector<1x8x32xf32> to vector<8x32xf32>
    %5 = arith.truncf %4 : vector<8x32xf32> to vector<8x32xbf16>
    %c0_3 = arith.constant 0 : index
    %c0_4 = arith.constant 0 : index
    %6 = vector.load %arg5[%c0_3, %c0_4] : memref<32x16xbf16, #tpu.memory_space<vmem>>, vector<32x16xbf16>
    %cst = arith.constant dense<0.000000e+00> : vector<8x16xf32>
    %7 = tpu.matmul %5, %6, %cst {dimension_numbers = #tpu.dot_dimension_numbers<[1], [0], [0], [1], [0, 0, 1, 1], [], []>} : vector<8x32xbf16>, vector<32x16xbf16>, vector<8x16xf32> -> vector<8x16xf32>
    %8 = arith.truncf %7 : vector<8x16xf32> to vector<8x16xbf16>
    %9 = vector.extract_strided_slice %8 {offsets = [0, 0], sizes = [8, 8], strides = [1, 1]} : vector<8x16xbf16> to vector<8x8xbf16>
    %10 = vector.extract_strided_slice %8 {offsets = [0, 8], sizes = [8, 8], strides = [1, 1]} : vector<8x16xbf16> to vector<8x8xbf16>
    %11 = vector.shape_cast %9 : vector<8x8xbf16> to vector<1x8x8xbf16>
    %12 = vector.shape_cast %10 : vector<8x8xbf16> to vector<1x8x8xbf16>
    %13 = tpu.concatenate %11, %12 in 0 : vector<1x8x8xbf16>, vector<1x8x8xbf16> -> vector<2x8x8xbf16>
    %c0_5 = arith.constant 0 : index
    %c0_6 = arith.constant 0 : index
    %c0_7 = arith.constant 0 : index
    %14 = vector.load %arg13[%c0_5, %c0_6, %c0_7] : memref<2x8x8xbf16, #tpu.memory_space<vmem>>, vector<2x8x8xbf16>
    %c0_8 = arith.constant 0 : index
    %c0_9 = arith.constant 0 : index
    %c0_10 = arith.constant 0 : index
    %15 = vector.load %arg14[%c0_8, %c0_9, %c0_10] : memref<2x8x8xbf16, #tpu.memory_space<vmem>>, vector<2x8x8xbf16>
    %cst_11 = arith.constant dense<0.000000e+00> : vector<2x8x8xf32>
    %16 = tpu.matmul %13, %14, %cst_11 {dimension_numbers = #tpu.dot_dimension_numbers<[2], [2], [1], [1], [0, 0, 0, 1, 1, 1], [0], [0]>} : vector<2x8x8xbf16>, vector<2x8x8xbf16>, vector<2x8x8xf32> -> vector<2x8x8xf32>
    %cst_12 = arith.constant dense<0xFF800000> : vector<2x8xf32>
    %17 = vector.multi_reduction <maximumf>, %16, %cst_12 [2] : vector<2x8x8xf32> to vector<2x8xf32>
    %18 = vector.shape_cast %17 : vector<2x8xf32> to vector<2x8x1xf32>
    %19 = vector.broadcast %18 : vector<2x8x1xf32> to vector<2x8x8xf32>
    %20 = arith.subf %16, %19 : vector<2x8x8xf32>
    %21 = math.exp %20 : vector<2x8x8xf32>
    %cst_13 = arith.constant dense<0.000000e+00> : vector<2x8xf32>
    %22 = vector.multi_reduction <add>, %21, %cst_13 [2] : vector<2x8x8xf32> to vector<2x8xf32>
    %23 = vector.shape_cast %22 : vector<2x8xf32> to vector<2x8x1xf32>
    %24 = tpu.reciprocal %23 {approx = true} : vector<2x8x1xf32> -> vector<2x8x1xf32>
    %25 = vector.broadcast %24 : vector<2x8x1xf32> to vector<2x8x8xf32>
    %26 = arith.mulf %21, %25 : vector<2x8x8xf32>
    %27 = arith.truncf %26 : vector<2x8x8xf32> to vector<2x8x8xbf16>
    %c0_14 = arith.constant 0 : index
    %c0_15 = arith.constant 0 : index
    %c0_16 = arith.constant 0 : index
    %c0_17 = arith.constant 0 : index
    %28 = vector.load %arg12[%c0_14, %c0_15, %c0_16, %c0_17] : memref<2x1x8x8xbf16, #tpu.memory_space<vmem>>, vector<2x1x8x8xbf16>
    %29 = vector.shape_cast %28 : vector<2x1x8x8xbf16> to vector<2x8x8xbf16>
    %30 = vector.shape_cast %27 : vector<2x8x8xbf16> to vector<2x1x8x8xbf16>
    tpu.vector_store %arg12[%c0_14, %c0_15, %c0_16, %c0_17], %30 {strides = array<i32>} : memref<2x1x8x8xbf16, #tpu.memory_space<vmem>>, vector<2x1x8x8xbf16>,
    %cst_18 = arith.constant dense<0.000000e+00> : vector<2x8x8xf32>
    %31 = tpu.matmul %27, %15, %cst_18 {dimension_numbers = #tpu.dot_dimension_numbers<[2], [1], [1], [2], [0, 0, 0, 1, 1, 2], [0], [0]>} : vector<2x8x8xbf16>, vector<2x8x8xbf16>, vector<2x8x8xf32> -> vector<2x8x8xf32>
    %32 = vector.extract_strided_slice %31 {offsets = [0, 0, 0], sizes = [1, 8, 8], strides = [1, 1, 1]} : vector<2x8x8xf32> to vector<1x8x8xf32>
    %33 = vector.shape_cast %32 : vector<1x8x8xf32> to vector<8x8xf32>
    %34 = vector.extract_strided_slice %31 {offsets = [1, 0, 0], sizes = [1, 8, 8], strides = [1, 1, 1]} : vector<2x8x8xf32> to vector<1x8x8xf32>
    %35 = vector.shape_cast %34 : vector<1x8x8xf32> to vector<8x8xf32>
    %36 = tpu.concatenate %33, %35 in 1 : vector<8x8xf32>, vector<8x8xf32> -> vector<8x16xf32>
    %37 = arith.truncf %36 : vector<8x16xf32> to vector<8x16xbf16>
    %c0_19 = arith.constant 0 : index
    %c0_20 = arith.constant 0 : index
    %38 = vector.load %arg8[%c0_19, %c0_20] : memref<16x32xbf16, #tpu.memory_space<vmem>>, vector<16x32xbf16>
    %cst_21 = arith.constant dense<0.000000e+00> : vector<8x32xf32>
    %39 = tpu.matmul %37, %38, %cst_21 {dimension_numbers = #tpu.dot_dimension_numbers<[1], [0], [0], [1], [0, 0, 1, 1], [], []>} : vector<8x16xbf16>, vector<16x32xbf16>, vector<8x32xf32> -> vector<8x32xf32>
    %40 = arith.addf %39, %4 : vector<8x32xf32>
    %cst_22 = arith.constant dense<0.000000e+00> : vector<8xf32>
    %41 = vector.multi_reduction <add>, %40, %cst_22 [1] : vector<8x32xf32> to vector<8xf32>
    %42 = vector.shape_cast %41 : vector<8xf32> to vector<8x1xf32>
    %43 = arith.mulf %40, %40 : vector<8x32xf32>
    %cst_23 = arith.constant dense<0.000000e+00> : vector<8xf32>
    %44 = vector.multi_reduction <add>, %43, %cst_23 [1] : vector<8x32xf32> to vector<8xf32>
    %45 = vector.shape_cast %44 : vector<8xf32> to vector<8x1xf32>
    %cst_24 = arith.constant 3.125000e-02 : f32
    %46 = vector.broadcast %cst_24 : f32 to vector<8x1xf32>
    %47 = arith.mulf %42, %46 : vector<8x1xf32>
    %cst_25 = arith.constant 3.125000e-02 : f32
    %48 = vector.broadcast %cst_25 : f32 to vector<8x1xf32>
    %49 = arith.mulf %45, %48 : vector<8x1xf32>
    %50 = arith.mulf %47, %47 : vector<8x1xf32>
    %51 = arith.subf %49, %50 : vector<8x1xf32>
    %cst_26 = arith.constant 0.000000e+00 : f32
    %52 = vector.broadcast %cst_26 : f32 to vector<8x1xf32>
    %53 = arith.maximumf %51, %52 : vector<8x1xf32>
    %54 = vector.broadcast %47 : vector<8x1xf32> to vector<8x32xf32>
    %55 = arith.subf %40, %54 : vector<8x32xf32>
    %cst_27 = arith.constant 9.99999974E-6 : f32
    %56 = vector.broadcast %cst_27 : f32 to vector<8x1xf32>
    %57 = arith.addf %53, %56 : vector<8x1xf32>
    %58 = math.rsqrt %57 : vector<8x1xf32>
    %59 = vector.broadcast %58 : vector<8x1xf32> to vector<8x32xf32>
    %60 = arith.mulf %55, %59 : vector<8x32xf32>
    %c0_28 = arith.constant 0 : index
    %c0_29 = arith.constant 0 : index
    %61 = vector.load %arg9[%c0_28, %c0_29] : memref<1x32xf32, #tpu.memory_space<vmem>>, vector<1x32xf32>
    %62 = vector.broadcast %61 : vector<1x32xf32> to vector<8x32xf32>
    %63 = arith.mulf %60, %62 : vector<8x32xf32>
    %c0_30 = arith.constant 0 : index
    %c0_31 = arith.constant 0 : index
    %64 = vector.load %arg10[%c0_30, %c0_31] : memref<1x32xf32, #tpu.memory_space<vmem>>, vector<1x32xf32>
    %65 = vector.broadcast %64 : vector<1x32xf32> to vector<8x32xf32>
    %66 = arith.addf %63, %65 : vector<8x32xf32>
    %c0_32 = arith.constant 0 : index
    %c0_33 = arith.constant 0 : index
    %c0_34 = arith.constant 0 : index
    %67 = vector.load %arg11[%c0_32, %c0_33, %c0_34] : memref<1x8x32xf32, #tpu.memory_space<vmem>>, vector<1x8x32xf32>
    %68 = vector.shape_cast %67 : vector<1x8x32xf32> to vector<8x32xf32>
    %69 = vector.shape_cast %66 : vector<8x32xf32> to vector<1x8x32xf32>
    tpu.vector_store %arg11[%c0_32, %c0_33, %c0_34], %69 {strides = array<i32>} : memref<1x8x32xf32, #tpu.memory_space<vmem>>, vector<1x8x32xf32>,
    return
  }
  func.func @transform_0(%arg0: i32, %arg1: i32) -> (i32, i32, i32) {
    %c0_i32 = arith.constant 0 : i32
    %c0_i32_0 = arith.constant 0 : i32
    return %arg0, %arg1, %c0_i32 : i32, i32, i32
  }
  func.func @transform_1(%arg0: i32, %arg1: i32) -> (i32, i32, i32) {
    %c0_i32 = arith.constant 0 : i32
    %c0_i32_0 = arith.constant 0 : i32
    %c0_i32_1 = arith.constant 0 : i32
    return %arg0, %c0_i32, %c0_i32_0 : i32, i32, i32
  }
  func.func @transform_2(%arg0: i32, %arg1: i32) -> (i32, i32, i32) {
    %c0_i32 = arith.constant 0 : i32
    %c0_i32_0 = arith.constant 0 : i32
    %c0_i32_1 = arith.constant 0 : i32
    return %arg0, %c0_i32, %c0_i32_0 : i32, i32, i32
  }
  func.func @transform_3(%arg0: i32, %arg1: i32) -> (i32, i32) {
    %c0_i32 = arith.constant 0 : i32
    %c0_i32_0 = arith.constant 0 : i32
    %c0_i32_1 = arith.constant 0 : i32
    return %c0_i32, %c0_i32_0 : i32, i32
  }
  func.func @transform_4(%arg0: i32, %arg1: i32) -> (i32, i32) {
    %c0_i32 = arith.constant 0 : i32
    %c0_i32_0 = arith.constant 0 : i32
    %c0_i32_1 = arith.constant 0 : i32
    return %c0_i32, %c0_i32_0 : i32, i32
  }
  func.func @transform_5(%arg0: i32, %arg1: i32) -> (i32, i32) {
    %c0_i32 = arith.constant 0 : i32
    %c0_i32_0 = arith.constant 0 : i32
    %c0_i32_1 = arith.constant 0 : i32
    return %c0_i32, %c0_i32_0 : i32, i32
  }
  func.func @transform_6(%arg0: i32, %arg1: i32) -> (i32, i32) {
    %c0_i32 = arith.constant 0 : i32
    %c0_i32_0 = arith.constant 0 : i32
    %c0_i32_1 = arith.constant 0 : i32
    return %c0_i32, %c0_i32_0 : i32, i32
  }
  func.func @transform_7(%arg0: i32, %arg1: i32) -> (i32, i32) {
    %c0_i32 = arith.constant 0 : i32
    %c0_i32_0 = arith.constant 0 : i32
    %c0_i32_1 = arith.constant 0 : i32
    return %c0_i32, %c0_i32_0 : i32, i32
  }
  func.func @transform_8(%arg0: i32, %arg1: i32) -> (i32, i32) {
    %c0_i32 = arith.constant 0 : i32
    %c0_i32_0 = arith.constant 0 : i32
    %c0_i32_1 = arith.constant 0 : i32
    return %c0_i32, %c0_i32_0 : i32, i32
  }
  func.func @transform_9(%arg0: i32, %arg1: i32) -> (i32, i32, i32) {
    %c0_i32 = arith.constant 0 : i32
    %c0_i32_0 = arith.constant 0 : i32
    return %arg0, %arg1, %c0_i32 : i32, i32, i32
  }
  func.func @transform_10(%arg0: i32, %arg1: i32) -> (i32, i32, i32, i32) {
    %c0_i32 = arith.constant 0 : i32
    %c0_i32_0 = arith.constant 0 : i32
    %c0_i32_1 = arith.constant 0 : i32
    return %c0_i32, %arg0, %arg1, %c0_i32_0 : i32, i32, i32, i32
  }
}

</mosaic_0001>

<llo_original>
// kernel: tpu_custom_call.1
$region0: #{tpu_custom_call.1}
  #allocation0 [shape = 'u32[]', space=smem, size = 0x4, offset = 0x4, fixed_abs, tag = 'smem constant byte address 0x4 - core index']
  #allocation1 [shape = 'u32[144,128]{1,0:T(1,128)}', space=vmem, size = 0x12000, scoped, tag = 'internal scratch']
  #allocation2 [shape = 'bf16[2,8,8]{2,1,0:T(8,128)(2,1)}', space=vmem, size = 0x1000, scoped, tag = 'scratch operand']
  #allocation3 [shape = 'bf16[2,8,8]{2,1,0:T(8,128)(2,1)}', space=vmem, size = 0x1000, scoped, tag = 'scratch operand']
  %s0 = inlined_call_operand.vmem [shape: f32[2,8,32], index: 0, kind: input, shape index: {}]
  %s1 = inlined_call_operand.vmem [shape: bf16[2,8,32], index: 1, kind: input, shape index: {}]
  %s2 = inlined_call_operand.vmem [shape: bf16[2,8,32], index: 2, kind: input, shape index: {}]
  %s3 = inlined_call_operand.vmem [shape: bf16[32,16], index: 3, kind: input, shape index: {}]
  %s4 = inlined_call_operand.vmem [shape: bf16[32,16], index: 4, kind: input, shape index: {}]
  %s5 = inlined_call_operand.vmem [shape: bf16[32,16], index: 5, kind: input, shape index: {}]
  %s6 = inlined_call_operand.vmem [shape: bf16[16,32], index: 6, kind: input, shape index: {}]
  %s7 = inlined_call_operand.vmem [shape: f32[1,32], index: 7, kind: input, shape index: {}]
  %s8 = inlined_call_operand.vmem [shape: f32[1,32], index: 8, kind: input, shape index: {}]
  %s9 = inlined_call_operand.hbm [shape: f32[2,8,32], index: 9, kind: output, shape index: {0}]
  %s10 = inlined_call_operand.hbm [shape: bf16[2,2,8,8], index: 10, kind: output, shape index: {1}]
  %11 = xla_tuple %s9, %s10
  %s12 = sld [smem:[#allocation0]]
  $region81: #{tpu_custom_call.1} parent=0
    _
  %s14 = ssub.s32 1, %s12
  %s15 = scalar_select 0, %s14, %s12
  $region1: #{tpu_custom_call.1} parent=0
    #allocation4 [shape = 'u8[8192]{0}', space=vmem, size = 0x2000, scoped, tag = 'output window, operand 0']
    #allocation5 [shape = 's32[2]{0}', space=sflag, size = 0x8, scoped, tag = 'scoped memory for tpu_custom_call.1']
    #allocation6 [shape = 'u8[8192]{0}', space=vmem, size = 0x2000, scoped, tag = 'output window, operand 1']
    #allocation7 [shape = 's32[2]{0}', space=sflag, size = 0x8, scoped, tag = 'scoped memory for tpu_custom_call.1']
    %16 = vsyncpa [#allocation5], 0
    %s17 = scalar_lea.sflag [#allocation5], 1
    %18 = vsyncpa %s17, 0
    %19 = vsyncpa [#allocation7], 0
    %s20 = scalar_lea.sflag [#allocation7], 1
    %21 = vsyncpa %s20, 0
    loop: start=0, step=1, limit=4
    $region2: #{tpu_custom_call.1} parent=1 // loop_pre_header
      _
    $region3: #{tpu_custom_call.1} parent=1 // loop_header
      %s23 = sphi 0, %s27
      %p24 = scmp.ge.s32.totalorder %s23, 4
      %s30 = sphi 0, %s42
      %s31 = sphi 0, %s38
      %s32 = sphi 0, %s30
      %s33 = sphi 0, %s31
      %s34 = sphi 0, %s32
      %s35 = sphi 0, %s33
      %s47 = sphi 0, %s49
      %s50 = sphi 0, %s47
      %s51 = sphi 0, %s50
      %s67 = sphi 0, %s51
      %s73 = sphi 0, %s75
      %s76 = sphi 0, %s73
      %s77 = sphi 0, %s76
      %s93 = sphi 0, %s77
      %s99 = sphi 0, %s101
      %s102 = sphi 0, %s99
      %s103 = sphi 0, %s102
      %s119 = sphi 0, %s103
      %s123 = sphi 0, %s123
      %s125 = sphi 0, %s123
      %s126 = sphi 0, %s125
      %s140 = sphi 0, %s126
      %s144 = sphi 0, %s144
      %s146 = sphi 0, %s144
      %s147 = sphi 0, %s146
      %s161 = sphi 0, %s147
      %s165 = sphi 0, %s165
      %s167 = sphi 0, %s165
      %s168 = sphi 0, %s167
      %s182 = sphi 0, %s168
      %s186 = sphi 0, %s186
      %s188 = sphi 0, %s186
      %s189 = sphi 0, %s188
      %s203 = sphi 0, %s189
      %s207 = sphi 0, %s207
      %s209 = sphi 0, %s207
      %s210 = sphi 0, %s209
      %s224 = sphi 0, %s210
      %s228 = sphi 0, %s228
      %s230 = sphi 0, %s228
      %s231 = sphi 0, %s230
      %s245 = sphi 0, %s231
      %s253 = sphi 0, %s255
      %s256 = sphi 0, %s253
      %s257 = sphi 0, %s256
      %s273 = sphi 0, %s257
      %s281 = sphi 0, %s283
      %s284 = sphi 0, %s281
      %s285 = sphi 0, %s284
      %s301 = sphi 0, %s285
    $region4: #{tpu_custom_call.1} parent=1 // loop_header_branch
      %26 = sbr.rel (%p24) target = $region8
    $region5: #{tpu_custom_call.1} parent=1 // loop_body
      %s28 = ssub.s32 %s23, 1
      %s29 = ssub.s32 %s23, 2
      %s36 = sadd.s32 1, %s31
      %p37 = scmp.ge.s32.totalorder %s36, 1
      %s38 = scalar_select %p37, 0, %s36
      %s39 = sadd.s32 1, %s30
      %s40 = scalar_select %p37, %s39, %s30
      %p41 = scmp.ge.s32.totalorder %s40, 2
      %s42 = scalar_select %p41, 0, %s40
      %s43 = ssub.s32 %s30, %s42
      %s44 = ssub.s32 %s31, %s38
      %s45 = sor.u32 %s43, %s44
      %p46 = scmp.eq.s32.totalorder %s45, 0
      %s48 = sadd.s32 %s47, 1
      %s49 = scalar_select %p46, %s47, %s48
      %p52 = pneg %p46
      %p53 = scmp.eq.s32.totalorder %s23, 1
      %p54 = por %p52, %p53
      %p55 = scmp.ne.s32.totalorder %s47, %s50
      %p56 = scmp.eq.s32.totalorder %s23, 0
      %p57 = por %p55, %p56
      %p58 = scmp.ne.s32.totalorder %s47, %s50
      %p59 = scmp.eq.s32.totalorder %s28, 1
      %p60 = por %p58, %p59
      %p61 = scmp.ne.s32.totalorder %s50, %s51
      %p62 = scmp.eq.s32.totalorder %s28, 0
      %p63 = por %p61, %p62
      %p64 = scmp.ne.s32.totalorder %s50, %s51
      %p65 = scmp.eq.s32.totalorder %s29, 1
      %p66 = por %p64, %p65
      %p68 = scmp.ne.s32.totalorder %s51, %s67
      %p69 = scmp.eq.s32.totalorder %s29, 0
      %p70 = por %p68, %p69
      %s71 = ssub.s32 %s30, %s42
      %p72 = scmp.eq.s32.totalorder %s71, 0
      %s74 = sadd.s32 %s73, 1
      %s75 = scalar_select %p72, %s73, %s74
      %p78 = pneg %p72
      %p79 = scmp.eq.s32.totalorder %s23, 1
      %p80 = por %p78, %p79
      %p81 = scmp.ne.s32.totalorder %s73, %s76
      %p82 = scmp.eq.s32.totalorder %s23, 0
      %p83 = por %p81, %p82
      %p84 = scmp.ne.s32.totalorder %s73, %s76
      %p85 = scmp.eq.s32.totalorder %s28, 1
      %p86 = por %p84, %p85
      %p87 = scmp.ne.s32.totalorder %s76, %s77
      %p88 = scmp.eq.s32.totalorder %s28, 0
      %p89 = por %p87, %p88
      %p90 = scmp.ne.s32.totalorder %s76, %s77
      %p91 = scmp.eq.s32.totalorder %s29, 1
      %p92 = por %p90, %p91
      %p94 = scmp.ne.s32.totalorder %s77, %s93
      %p95 = scmp.eq.s32.totalorder %s29, 0
      %p96 = por %p94, %p95
      %s97 = ssub.s32 %s30, %s42
      %p98 = scmp.eq.s32.totalorder %s97, 0
      %s100 = sadd.s32 %s99, 1
      %s101 = scalar_select %p98, %s99, %s100
      %p104 = pneg %p98
      %p105 = scmp.eq.s32.totalorder %s23, 1
      %p106 = por %p104, %p105
      %p107 = scmp.ne.s32.totalorder %s99, %s102
      %p108 = scmp.eq.s32.totalorder %s23, 0
      %p109 = por %p107, %p108
      %p110 = scmp.ne.s32.totalorder %s99, %s102
      %p111 = scmp.eq.s32.totalorder %s28, 1
      %p112 = por %p110, %p111
      %p113 = scmp.ne.s32.totalorder %s102, %s103
      %p114 = scmp.eq.s32.totalorder %s28, 0
      %p115 = por %p113, %p114
      %p116 = scmp.ne.s32.totalorder %s102, %s103
      %p117 = scmp.eq.s32.totalorder %s29, 1
      %p118 = por %p116, %p117
      %p120 = scmp.ne.s32.totalorder %s103, %s119
      %p121 = scmp.eq.s32.totalorder %s29, 0
      %p122 = por %p120, %p121
      %s124 = sadd.s32 %s123, 1
      %p127 = scmp.eq.s32.totalorder %s23, 1
      %p128 = scmp.ne.s32.totalorder %s123, %s125
      %p129 = scmp.eq.s32.totalorder %s23, 0
      %p130 = por %p128, %p129
      %p131 = scmp.ne.s32.totalorder %s123, %s125
      %p132 = scmp.eq.s32.totalorder %s28, 1
      %p133 = por %p131, %p132
      %p134 = scmp.ne.s32.totalorder %s125, %s126
      %p135 = scmp.eq.s32.totalorder %s28, 0
      %p136 = por %p134, %p135
      %p137 = scmp.ne.s32.totalorder %s125, %s126
      %p138 = scmp.eq.s32.totalorder %s29, 1
      %p139 = por %p137, %p138
      %p141 = scmp.ne.s32.totalorder %s126, %s140
      %p142 = scmp.eq.s32.totalorder %s29, 0
      %p143 = por %p141, %p142
      %s145 = sadd.s32 %s144, 1
      %p148 = scmp.eq.s32.totalorder %s23, 1
      %p149 = scmp.ne.s32.totalorder %s144, %s146
      %p150 = scmp.eq.s32.totalorder %s23, 0
      %p151 = por %p149, %p150
      %p152 = scmp.ne.s32.totalorder %s144, %s146
      %p153 = scmp.eq.s32.totalorder %s28, 1
      %p154 = por %p152, %p153
      %p155 = scmp.ne.s32.totalorder %s146, %s147
      %p156 = scmp.eq.s32.totalorder %s28, 0
      %p157 = por %p155, %p156
      %p158 = scmp.ne.s32.totalorder %s146, %s147
      %p159 = scmp.eq.s32.totalorder %s29, 1
      %p160 = por %p158, %p159
      %p162 = scmp.ne.s32.totalorder %s147, %s161
      %p163 = scmp.eq.s32.totalorder %s29, 0
      %p164 = por %p162, %p163
      %s166 = sadd.s32 %s165, 1
      %p169 = scmp.eq.s32.totalorder %s23, 1
      %p170 = scmp.ne.s32.totalorder %s165, %s167
      %p171 = scmp.eq.s32.totalorder %s23, 0
      %p172 = por %p170, %p171
      %p173 = scmp.ne.s32.totalorder %s165, %s167
      %p174 = scmp.eq.s32.totalorder %s28, 1
      %p175 = por %p173, %p174
      %p176 = scmp.ne.s32.totalorder %s167, %s168
      %p177 = scmp.eq.s32.totalorder %s28, 0
      %p178 = por %p176, %p177
      %p179 = scmp.ne.s32.totalorder %s167, %s168
      %p180 = scmp.eq.s32.totalorder %s29, 1
      %p181 = por %p179, %p180
      %p183 = scmp.ne.s32.totalorder %s168, %s182
      %p184 = scmp.eq.s32.totalorder %s29, 0
      %p185 = por %p183, %p184
      %s187 = sadd.s32 %s186, 1
      %p190 = scmp.eq.s32.totalorder %s23, 1
      %p191 = scmp.ne.s32.totalorder %s186, %s188
      %p192 = scmp.eq.s32.totalorder %s23, 0
      %p193 = por %p191, %p192
      %p194 = scmp.ne.s32.totalorder %s186, %s188
      %p195 = scmp.eq.s32.totalorder %s28, 1
      %p196 = por %p194, %p195
      %p197 = scmp.ne.s32.totalorder %s188, %s189
      %p198 = scmp.eq.s32.totalorder %s28, 0
      %p199 = por %p197, %p198
      %p200 = scmp.ne.s32.totalorder %s188, %s189
      %p201 = scmp.eq.s32.totalorder %s29, 1
      %p202 = por %p200, %p201
      %p204 = scmp.ne.s32.totalorder %s189, %s203
      %p205 = scmp.eq.s32.totalorder %s29, 0
      %p206 = por %p204, %p205
      %s208 = sadd.s32 %s207, 1
      %p211 = scmp.eq.s32.totalorder %s23, 1
      %p212 = scmp.ne.s32.totalorder %s207, %s209
      %p213 = scmp.eq.s32.totalorder %s23, 0
      %p214 = por %p212, %p213
      %p215 = scmp.ne.s32.totalorder %s207, %s209
      %p216 = scmp.eq.s32.totalorder %s28, 1
      %p217 = por %p215, %p216
      %p218 = scmp.ne.s32.totalorder %s209, %s210
      %p219 = scmp.eq.s32.totalorder %s28, 0
      %p220 = por %p218, %p219
      %p221 = scmp.ne.s32.totalorder %s209, %s210
      %p222 = scmp.eq.s32.totalorder %s29, 1
      %p223 = por %p221, %p222
      %p225 = scmp.ne.s32.totalorder %s210, %s224
      %p226 = scmp.eq.s32.totalorder %s29, 0
      %p227 = por %p225, %p226
      %s229 = sadd.s32 %s228, 1
      %p232 = scmp.eq.s32.totalorder %s23, 1
      %p233 = scmp.ne.s32.totalorder %s228, %s230
      %p234 = scmp.eq.s32.totalorder %s23, 0
      %p235 = por %p233, %p234
      %p236 = scmp.ne.s32.totalorder %s228, %s230
      %p237 = scmp.eq.s32.totalorder %s28, 1
      %p238 = por %p236, %p237
      %p239 = scmp.ne.s32.totalorder %s230, %s231
      %p240 = scmp.eq.s32.totalorder %s28, 0
      %p241 = por %p239, %p240
      %p242 = scmp.ne.s32.totalorder %s230, %s231
      %p243 = scmp.eq.s32.totalorder %s29, 1
      %p244 = por %p242, %p243
      %p246 = scmp.ne.s32.totalorder %s231, %s245
      %p247 = scmp.eq.s32.totalorder %s29, 0
      %p248 = por %p246, %p247
      %s249 = ssub.s32 %s30, %s42
      %s250 = ssub.s32 %s31, %s38
      %s251 = sor.u32 %s249, %s250
      %p252 = scmp.eq.s32.totalorder %s251, 0
      %s254 = sadd.s32 %s253, 1
      %s255 = scalar_select %p252, %s253, %s254
      %p258 = pneg %p252
      %p259 = scmp.eq.s32.totalorder %s23, 1
      %p260 = por %p258, %p259
      %p261 = scmp.ne.s32.totalorder %s253, %s256
      %p262 = scmp.eq.s32.totalorder %s23, 0
      %p263 = por %p261, %p262
      %p264 = scmp.ne.s32.totalorder %s253, %s256
      %p265 = scmp.eq.s32.totalorder %s28, 1
      %p266 = por %p264, %p265
      %p267 = scmp.ne.s32.totalorder %s256, %s257
      %p268 = scmp.eq.s32.totalorder %s28, 0
      %p269 = por %p267, %p268
      %p270 = scmp.ne.s32.totalorder %s256, %s257
      %p271 = scmp.eq.s32.totalorder %s29, 1
      %p272 = por %p270, %p271
      %p274 = scmp.ne.s32.totalorder %s257, %s273
      %p275 = scmp.eq.s32.totalorder %s29, 0
      %p276 = por %p274, %p275
      %s277 = ssub.s32 %s30, %s42
      %s278 = ssub.s32 %s31, %s38
      %s279 = sor.u32 %s277, %s278
      %p280 = scmp.eq.s32.totalorder %s279, 0
      %s282 = sadd.s32 %s281, 1
      %s283 = scalar_select %p280, %s281, %s282
      %p286 = pneg %p280
      %p287 = scmp.eq.s32.totalorder %s23, 1
      %p288 = por %p286, %p287
      %p289 = scmp.ne.s32.totalorder %s281, %s284
      %p290 = scmp.eq.s32.totalorder %s23, 0
      %p291 = por %p289, %p290
      %p292 = scmp.ne.s32.totalorder %s281, %s284
      %p293 = scmp.eq.s32.totalorder %s28, 1
      %p294 = por %p292, %p293
      %p295 = scmp.ne.s32.totalorder %s284, %s285
      %p296 = scmp.eq.s32.totalorder %s28, 0
      %p297 = por %p295, %p296
      %p298 = scmp.ne.s32.totalorder %s284, %s285
      %p299 = scmp.eq.s32.totalorder %s29, 1
      %p300 = por %p298, %p299
      %p302 = scmp.ne.s32.totalorder %s285, %s301
      %p303 = scmp.eq.s32.totalorder %s29, 0
      %p304 = por %p302, %p303
      %p305 = scmp.le.s32.totalorder 1, %s23
      %p306 = scmp.lt.s32.totalorder %s23, 3
      %p307 = pnand %p305, %p306
      %p308 = pneg %p307
      // Predicated region
      $region9: #{tpu_custom_call.1} parent=5 // pred_check
        _
      $region10: #{tpu_custom_call.1} parent=5 // pred_check_branch
        %310 = sbr.rel (%p307) target = $region12
      $region11: #{tpu_custom_call.1} parent=5 // pred_region
        %s311 = ssub.s32 %s23, 1
        // Predicated region
        $region13: #{tpu_custom_call.1} parent=11 // pred_check
          %p312 = pneg %p136
        $region14: #{tpu_custom_call.1} parent=11 // pred_check_branch
          %314 = sbr.rel (%p312) target = $region16
        $region15: #{tpu_custom_call.1} parent=11 // pred_region
          _
        $region16: #{tpu_custom_call.1} parent=11 // pred_fallthru
          _
        // Predicated region
        $region17: #{tpu_custom_call.1} parent=11 // pred_check
          %p315 = pneg %p157
        $region18: #{tpu_custom_call.1} parent=11 // pred_check_branch
          %317 = sbr.rel (%p315) target = $region20
        $region19: #{tpu_custom_call.1} parent=11 // pred_region
          _
        $region20: #{tpu_custom_call.1} parent=11 // pred_fallthru
          _
        // Predicated region
        $region21: #{tpu_custom_call.1} parent=11 // pred_check
          %p318 = pneg %p178
        $region22: #{tpu_custom_call.1} parent=11 // pred_check_branch
          %320 = sbr.rel (%p318) target = $region24
        $region23: #{tpu_custom_call.1} parent=11 // pred_region
          _
        $region24: #{tpu_custom_call.1} parent=11 // pred_fallthru
          _
        // Predicated region
        $region25: #{tpu_custom_call.1} parent=11 // pred_check
          %p321 = pneg %p199
        $region26: #{tpu_custom_call.1} parent=11 // pred_check_branch
          %323 = sbr.rel (%p321) target = $region28
        $region27: #{tpu_custom_call.1} parent=11 // pred_region
          _
        $region28: #{tpu_custom_call.1} parent=11 // pred_fallthru
          _
        // Predicated region
        $region29: #{tpu_custom_call.1} parent=11 // pred_check
          %p324 = pneg %p220
        $region30: #{tpu_custom_call.1} parent=11 // pred_check_branch
          %326 = sbr.rel (%p324) target = $region32
        $region31: #{tpu_custom_call.1} parent=11 // pred_region
          _
        $region32: #{tpu_custom_call.1} parent=11 // pred_fallthru
          _
        // Predicated region
        $region33: #{tpu_custom_call.1} parent=11 // pred_check
          %p327 = pneg %p241
        $region34: #{tpu_custom_call.1} parent=11 // pred_check_branch
          %329 = sbr.rel (%p327) target = $region36
        $region35: #{tpu_custom_call.1} parent=11 // pred_region
          _
        $region36: #{tpu_custom_call.1} parent=11 // pred_fallthru
          _
      $region12: #{tpu_custom_call.1} parent=5 // pred_fallthru
        _
      %p330 = scmp.lt.s32.totalorder %s23, 2
      // Predicated region
      $region37: #{tpu_custom_call.1} parent=5 // pred_check
        %p331 = pneg %p330
      $region38: #{tpu_custom_call.1} parent=5 // pred_check_branch
        %333 = sbr.rel (%p331) target = $region40
      $region39: #{tpu_custom_call.1} parent=5 // pred_region
        // Predicated region
        $region41: #{tpu_custom_call.1} parent=39 // pred_check
          %p334 = pneg %p57
        $region42: #{tpu_custom_call.1} parent=39 // pred_check_branch
          %336 = sbr.rel (%p334) target = $region44
        $region43: #{tpu_custom_call.1} parent=39 // pred_region
          %p337 = scmp.lt.s32.totalorder %s30, 1
          %s338 = scalar_select %p337, %s30, 1
          %p339 = scmp.lt.s32.totalorder %s31, 0
          %s340 = scalar_select %p339, %s31, 0
          %s341 = sadd.s32 %s340, %s338
          %s342 = smul.addr %s341, 8
          %s343 = scalar_lea.vmem %s0, %s342
        $region44: #{tpu_custom_call.1} parent=39 // pred_fallthru
          _
        // Predicated region
        $region45: #{tpu_custom_call.1} parent=39 // pred_check
          %p344 = pneg %p83
        $region46: #{tpu_custom_call.1} parent=39 // pred_check_branch
          %346 = sbr.rel (%p344) target = $region48
        $region47: #{tpu_custom_call.1} parent=39 // pred_region
          %p347 = scmp.lt.s32.totalorder %s30, 1
          %s348 = scalar_select %p347, %s30, 1
          %s349 = smul.addr %s348, 4
          %s350 = scalar_lea.vmem %s1, %s349
        $region48: #{tpu_custom_call.1} parent=39 // pred_fallthru
          _
        // Predicated region
        $region49: #{tpu_custom_call.1} parent=39 // pred_check
          %p351 = pneg %p109
        $region50: #{tpu_custom_call.1} parent=39 // pred_check_branch
          %353 = sbr.rel (%p351) target = $region52
        $region51: #{tpu_custom_call.1} parent=39 // pred_region
          %p354 = scmp.lt.s32.totalorder %s30, 1
          %s355 = scalar_select %p354, %s30, 1
          %s356 = smul.addr %s355, 4
          %s357 = scalar_lea.vmem %s2, %s356
        $region52: #{tpu_custom_call.1} parent=39 // pred_fallthru
          _
      $region40: #{tpu_custom_call.1} parent=5 // pred_fallthru
        _
      %p358 = scmp.le.s32.totalorder 1, %s23
      %p359 = scmp.lt.s32.totalorder %s23, 3
      %p360 = pnand %p358, %p359
      %p361 = pneg %p360
      // Predicated region
      $region53: #{tpu_custom_call.1} parent=5 // pred_check
        _
      $region54: #{tpu_custom_call.1} parent=5 // pred_check_branch
        %363 = sbr.rel (%p360) target = $region56
      $region55: #{tpu_custom_call.1} parent=5 // pred_region
        %s364 = ssub.s32 %s23, 1
        %p365 = scmp.lt.s32.totalorder %s32, 1
        %s366 = scalar_select %p365, %s32, 1
        %p367 = scmp.lt.s32.totalorder %s33, 0
        %s368 = scalar_select %p367, %s33, 0
        %s369 = sadd.s32 %s368, %s366
        %s370 = smul.addr %s369, 8
        %s371 = scalar_lea.vmem %s0, %s370
        %p372 = pneg %p63
        %p373 = pneg %p60
        %p374 = scmp.lt.s32.totalorder %s32, 1
        %s375 = scalar_select %p374, %s32, 1
        %s376 = smul.addr %s375, 4
        %s377 = scalar_lea.vmem %s1, %s376
        %p378 = pneg %p89
        %p379 = pneg %p86
        %p380 = scmp.lt.s32.totalorder %s32, 1
        %s381 = scalar_select %p380, %s32, 1
        %s382 = smul.addr %s381, 4
        %s383 = scalar_lea.vmem %s2, %s382
        %p384 = pneg %p115
        %p385 = pneg %p112
        %p386 = pneg %p136
        %p387 = pneg %p133
        %p388 = pneg %p157
        %p389 = pneg %p154
        %p390 = pneg %p178
        %p391 = pneg %p175
        %p392 = pneg %p199
        %p393 = pneg %p196
        %p394 = pneg %p220
        %p395 = pneg %p217
        %p396 = pneg %p241
        %p397 = pneg %p238
        %p398 = pneg %p269
        %p399 = pneg %p266
        %s400 = sand.u32 %s256, 1
        %s401 = scalar_lea.sflag [#allocation5], %s400
        %s402 = sand.u32 %s256, 1
        %s403 = smul.addr %s402, 8
        %s404 = scalar_lea.vmem [#allocation4], %s403
        %p405 = pneg %p297
        %p406 = pneg %p294
        %s407 = sand.u32 %s284, 1
        %s408 = scalar_lea.sflag [#allocation7], %s407
        %s409 = sand.u32 %s284, 1
        %s410 = smul.addr %s409, 8
        %s411 = scalar_lea.vmem [#allocation6], %s410
        %p412 = scmp.lt.s32.totalorder %s32, 1
        %s413 = scalar_select %p412, %s32, 1
        %p414 = scmp.lt.s32.totalorder %s33, 0
        %s415 = scalar_select %p414, %s33, 0
        %s416 = sadd.s32 %s415, %s413
        %s417 = smul.addr %s416, 8
        %s418 = scalar_lea.vmem %s0, %s417
        %p419 = scmp.lt.s32.totalorder %s32, 1
        %s420 = scalar_select %p419, %s32, 1
        %s421 = smul.addr %s420, 4
        %s422 = scalar_lea.vmem %s1, %s421
        %p423 = scmp.lt.s32.totalorder %s32, 1
        %s424 = scalar_select %p423, %s32, 1
        %s425 = smul.addr %s424, 4
        %s426 = scalar_lea.vmem %s2, %s425
        %p428 = scmp.eq.s32.totalorder %s33, 0
        // Predicated region
        $region57: #{tpu_custom_call.1} parent=55 // pred_check
          %p429 = pneg %p428
        $region58: #{tpu_custom_call.1} parent=55 // pred_check_branch
          %431 = sbr.rel (%p429) target = $region60
        $region59: #{tpu_custom_call.1} parent=55 // pred_region
          %v432 = vld [vmem:[%s422] sm:$0xf]
          %v433 = vld [vmem:[%s426] sm:$0xf]
          %v434 = vld [vmem:[%s4] sm:$0xf]
          %v435 = vld [vmem:[%s4 + $0x4] sm:$0xf]
          %v436 = vld [vmem:[%s4 + $0x8] sm:$0xf]
          %v437 = vld [vmem:[%s4 + $0xc] sm:$0xf]
          %v442 = vunpack.c.l.b16 %v434
          %v443 = vunpack.c.l.b16 %v435
          %v444 = vunpack.c.l.b16 %v436
          %v445 = vunpack.c.l.b16 %v437
          %v446 = vpack.c.b16 %v443, %v442
          %v447 = vpack.c.b16 %v445, %v444
          %vm450 = vcmask 261120
          %v452 = vsel %vm450, %v432, 0
          %454 = vmatprep.subr.bf16.mxu0 0
          %455 = vmatpush1.bf16.msra.mxu0 0
          %456 = vmatprep.subr.bf16.mxu0 0
          %457 = vmatpush1.bf16.msra.mxu0 0
          %458 = vmatprep.subr.bf16.mxu0 0
          %459 = vmatpush1.bf16.msra.mxu0 0
          %460 = vmatprep.subr.bf16.mxu0 0
          %461 = vmatpush1.bf16.msra.mxu0 0
          %462 = vmatprep.subr.bf16.mxu0 0
          %463 = vmatpush1.bf16.msra.mxu0 0
          %464 = vmatprep.subr.bf16.mxu0 0
          %465 = vmatpush1.bf16.msra.mxu0 0
          %466 = vmatprep.subr.bf16.mxu0 0
          %467 = vmatpush1.bf16.msra.mxu0 %v447
          %468 = vmatprep.subr.bf16.mxu0 0
          %469 = vmatpush1.bf16.msra.mxu0 %v446
          %470 = vmatprep.subr.bf16.mxu0 0
          %471 = vmatpush2.bf16.msra.mxu0 0
          %472 = vmatprep.subr.bf16.mxu0 0
          %473 = vmatpush2.bf16.msra.mxu0 0
          %474 = vmatprep.subr.bf16.mxu0 0
          %475 = vmatpush2.bf16.msra.mxu0 0
          %476 = vmatprep.subr.bf16.mxu0 0
          %477 = vmatpush2.bf16.msra.mxu0 0
          %478 = vmatprep.subr.bf16.mxu0 0
          %479 = vmatpush2.bf16.msra.mxu0 0
          %480 = vmatprep.subr.bf16.mxu0 0
          %481 = vmatpush2.bf16.msra.mxu0 0
          %482 = vmatprep.subr.bf16.mxu0 0
          %483 = vmatpush2.bf16.msra.mxu0 0
          %484 = vmatprep.subr.bf16.mxu0 0
          %485 = vmatpush2.bf16.msra.mxu0 0
          %486 = vmatprep.mubr.bf16.mxu0 0
          %487 = vmatmul.mubr.bf16.gmra.mxu0 %v452
          %v488 = vpop.f32.mrf.mxu0
          %v489 = vadd.f32 0.0, %v488
          %v490 = vpop.f32.mrf.mxu0
          %v491 = vpop.f32.mrf.mxu0
          %v492 = vpop.f32.mrf.mxu0
          %493 = vdwg.mxu0
          %v494 = vld [vmem:[%s5] sm:$0xf]
          %v495 = vld [vmem:[%s5 + $0x4] sm:$0xf]
          %v496 = vld [vmem:[%s5 + $0x8] sm:$0xf]
          %v497 = vld [vmem:[%s5 + $0xc] sm:$0xf]
          %v502 = vunpack.c.l.b16 %v494
          %v503 = vunpack.c.l.b16 %v495
          %v504 = vunpack.c.l.b16 %v496
          %v505 = vunpack.c.l.b16 %v497
          %v506 = vpack.c.b16 %v503, %v502
          %v507 = vpack.c.b16 %v505, %v504
          %v511 = vsel %vm450, %v433, 0
          %513 = vmatprep.subr.bf16.mxu0 0
          %514 = vmatpush1.bf16.msra.mxu0 0
          %515 = vmatprep.subr.bf16.mxu0 0
          %516 = vmatpush1.bf16.msra.mxu0 0
          %517 = vmatprep.subr.bf16.mxu0 0
          %518 = vmatpush1.bf16.msra.mxu0 0
          %519 = vmatprep.subr.bf16.mxu0 0
          %520 = vmatpush1.bf16.msra.mxu0 0
          %521 = vmatprep.subr.bf16.mxu0 0
          %522 = vmatpush1.bf16.msra.mxu0 0
          %523 = vmatprep.subr.bf16.mxu0 0
          %524 = vmatpush1.bf16.msra.mxu0 0
          %525 = vmatprep.subr.bf16.mxu0 0
          %526 = vmatpush1.bf16.msra.mxu0 %v507
          %527 = vmatprep.subr.bf16.mxu0 0
          %528 = vmatpush1.bf16.msra.mxu0 %v506
          %529 = vmatprep.subr.bf16.mxu0 0
          %530 = vmatpush2.bf16.msra.mxu0 0
          %531 = vmatprep.subr.bf16.mxu0 0
          %532 = vmatpush2.bf16.msra.mxu0 0
          %533 = vmatprep.subr.bf16.mxu0 0
          %534 = vmatpush2.bf16.msra.mxu0 0
          %535 = vmatprep.subr.bf16.mxu0 0
          %536 = vmatpush2.bf16.msra.mxu0 0
          %537 = vmatprep.subr.bf16.mxu0 0
          %538 = vmatpush2.bf16.msra.mxu0 0
          %539 = vmatprep.subr.bf16.mxu0 0
          %540 = vmatpush2.bf16.msra.mxu0 0
          %541 = vmatprep.subr.bf16.mxu0 0
          %542 = vmatpush2.bf16.msra.mxu0 0
          %543 = vmatprep.subr.bf16.mxu0 0
          %544 = vmatpush2.bf16.msra.mxu0 0
          %545 = vmatprep.mubr.bf16.mxu0 0
          %546 = vmatmul.mubr.bf16.gmra.mxu0 %v511
          %v547 = vpop.f32.mrf.mxu0
          %v548 = vadd.f32 0.0, %v547
          %v549 = vpop.f32.mrf.mxu0
          %v550 = vpop.f32.mrf.mxu0
          %v551 = vpop.f32.mrf.mxu0
          %552 = vdwg.mxu0
          %v553 = vpack.c.bf16 %v489, %v489
          %vm554 = vcmask 60416
          %555 = vst.msk [vmem:[#allocation2] sm:$0xf] %vm554, %v553
          %v556 = vpack.c.bf16 %v548, %v548
          %557 = vst.msk [vmem:[#allocation3] sm:$0xf] %vm554, %v556
          %v559 = vunpack.c.l.b16 %v553
          %v560 = vpack.c.b16 %v559, %v559
          %561 = vrot.lane.b32.xlu0 %v560, 120
          %v562 = vpop.permute.xlu0 %561
          %s564 = scalar_lea.vmem [#allocation2], 4
          %565 = vst.msk [vmem:[%s564] sm:$0xf] %vm554, %v562
          %v567 = vunpack.c.l.b16 %v556
          %v568 = vpack.c.b16 %v567, %v567
          %569 = vrot.lane.b32.xlu0 %v568, 120
          %v570 = vpop.permute.xlu0 %569
          %s572 = scalar_lea.vmem [#allocation3], 4
          %573 = vst.msk [vmem:[%s572] sm:$0xf] %vm554, %v570
        $region60: #{tpu_custom_call.1} parent=55 // pred_fallthru
          _
        %v574 = vld [vmem:[%s418] sm:$0xff]
        %v575 = vpack.c.bf16 %v574, %v574
        %v576 = vld [vmem:[%s3] sm:$0xf]
        %v577 = vld [vmem:[%s3 + $0x4] sm:$0xf]
        %v578 = vld [vmem:[%s3 + $0x8] sm:$0xf]
        %v579 = vld [vmem:[%s3 + $0xc] sm:$0xf]
        %v584 = vunpack.c.l.b16 %v576
        %v585 = vunpack.c.l.b16 %v577
        %v586 = vunpack.c.l.b16 %v578
        %v587 = vunpack.c.l.b16 %v579
        %v588 = vpack.c.b16 %v585, %v584
        %v589 = vpack.c.b16 %v587, %v586
        %vm592 = vcmask 261120
        %v594 = vsel %vm592, %v575, 0
        %596 = vmatprep.subr.bf16.mxu0 0
        %597 = vmatpush1.bf16.msra.mxu0 0
        %598 = vmatprep.subr.bf16.mxu0 0
        %599 = vmatpush1.bf16.msra.mxu0 0
        %600 = vmatprep.subr.bf16.mxu0 0
        %601 = vmatpush1.bf16.msra.mxu0 0
        %602 = vmatprep.subr.bf16.mxu0 0
        %603 = vmatpush1.bf16.msra.mxu0 0
        %604 = vmatprep.subr.bf16.mxu0 0
        %605 = vmatpush1.bf16.msra.mxu0 0
        %606 = vmatprep.subr.bf16.mxu0 0
        %607 = vmatpush1.bf16.msra.mxu0 0
        %608 = vmatprep.subr.bf16.mxu0 0
        %609 = vmatpush1.bf16.msra.mxu0 %v589
        %610 = vmatprep.subr.bf16.mxu0 0
        %611 = vmatpush1.bf16.msra.mxu0 %v588
        %612 = vmatprep.subr.bf16.mxu0 0
        %613 = vmatpush2.bf16.msra.mxu0 0
        %614 = vmatprep.subr.bf16.mxu0 0
        %615 = vmatpush2.bf16.msra.mxu0 0
        %616 = vmatprep.subr.bf16.mxu0 0
        %617 = vmatpush2.bf16.msra.mxu0 0
        %618 = vmatprep.subr.bf16.mxu0 0
        %619 = vmatpush2.bf16.msra.mxu0 0
        %620 = vmatprep.subr.bf16.mxu0 0
        %621 = vmatpush2.bf16.msra.mxu0 0
        %622 = vmatprep.subr.bf16.mxu0 0
        %623 = vmatpush2.bf16.msra.mxu0 0
        %624 = vmatprep.subr.bf16.mxu0 0
        %625 = vmatpush2.bf16.msra.mxu0 0
        %626 = vmatprep.subr.bf16.mxu0 0
        %627 = vmatpush2.bf16.msra.mxu0 0
        %628 = vmatprep.mubr.bf16.mxu0 0
        %629 = vmatmul.mubr.bf16.gmra.mxu0 %v594
        %v630 = vpop.f32.mrf.mxu0
        %v631 = vadd.f32 0.0, %v630
        %v632 = vpop.f32.mrf.mxu0
        %v633 = vpop.f32.mrf.mxu0
        %v634 = vpop.f32.mrf.mxu0
        %635 = vdwg.mxu0
        %v636 = vpack.c.bf16 %v631, %v631
        %638 = vrot.lane.b32.xlu0 %v636, 120
        %v639 = vpop.permute.xlu0 %638
        %v640 = vld [vmem:[#allocation2] sm:$0xf]
        %v641 = vld [vmem:[#allocation2 + $0x4] sm:$0xf]
        %v642 = vld [vmem:[#allocation3] sm:$0xf]
        %v643 = vld [vmem:[#allocation3 + $0x4] sm:$0xf]
        %vm644 = vcmask 64512
        %v646 = vsel %vm644, %v636, 0
        %v649 = vsel %vm644, %v640, 0
        %651 = vmatprep.subr.bf16.mxu0 0
        %652 = vmatpush1.bf16.xpose.msra.mxu0 0
        %653 = vmatprep.subr.bf16.mxu0 0
        %654 = vmatpush1.bf16.xpose.msra.mxu0 0
        %655 = vmatprep.subr.bf16.mxu0 0
        %656 = vmatpush1.bf16.xpose.msra.mxu0 0
        %657 = vmatprep.subr.bf16.mxu0 0
        %658 = vmatpush1.bf16.xpose.msra.mxu0 0
        %659 = vmatprep.subr.bf16.mxu0 0
        %660 = vmatpush1.bf16.xpose.msra.mxu0 0
        %661 = vmatprep.subr.bf16.mxu0 0
        %662 = vmatpush1.bf16.xpose.msra.mxu0 0
        %663 = vmatprep.subr.bf16.mxu0 0
        %664 = vmatpush1.bf16.xpose.msra.mxu0 0
        %665 = vmatprep.subr.bf16.mxu0 0
        %666 = vmatpush1.bf16.xpose.msra.mxu0 %v649
        %667 = vmatprep.subr.bf16.mxu0 0
        %668 = vmatpush2.bf16.xpose.msra.mxu0 0
        %669 = vmatprep.subr.bf16.mxu0 0
        %670 = vmatpush2.bf16.xpose.msra.mxu0 0
        %671 = vmatprep.subr.bf16.mxu0 0
        %672 = vmatpush2.bf16.xpose.msra.mxu0 0
        %673 = vmatprep.subr.bf16.mxu0 0
        %674 = vmatpush2.bf16.xpose.msra.mxu0 0
        %675 = vmatprep.subr.bf16.mxu0 0
        %676 = vmatpush2.bf16.xpose.msra.mxu0 0
        %677 = vmatprep.subr.bf16.mxu0 0
        %678 = vmatpush2.bf16.xpose.msra.mxu0 0
        %679 = vmatprep.subr.bf16.mxu0 0
        %680 = vmatpush2.bf16.xpose.msra.mxu0 0
        %681 = vmatprep.subr.bf16.mxu0 0
        %682 = vmatpush2.bf16.xpose.msra.mxu0 0
        %683 = vmatprep.mubr.bf16.mxu0 0
        %684 = vmatmul.mubr.bf16.gmra.mxu0 %v646
        %v685 = vpop.f32.mrf.mxu0
        %v686 = vadd.f32 0.0, %v685
        %v687 = vpop.f32.mrf.mxu0
        %v688 = vpop.f32.mrf.mxu0
        %v689 = vpop.f32.mrf.mxu0
        %690 = vdwg.mxu0
        %v692 = vsel %vm644, %v639, 0
        %v695 = vsel %vm644, %v641, 0
        %697 = vmatprep.subr.bf16.mxu0 0
        %698 = vmatpush1.bf16.xpose.msra.mxu0 0
        %699 = vmatprep.subr.bf16.mxu0 0
        %700 = vmatpush1.bf16.xpose.msra.mxu0 0
        %701 = vmatprep.subr.bf16.mxu0 0
        %702 = vmatpush1.bf16.xpose.msra.mxu0 0
        %703 = vmatprep.subr.bf16.mxu0 0
        %704 = vmatpush1.bf16.xpose.msra.mxu0 0
        %705 = vmatprep.subr.bf16.mxu0 0
        %706 = vmatpush1.bf16.xpose.msra.mxu0 0
        %707 = vmatprep.subr.bf16.mxu0 0
        %708 = vmatpush1.bf16.xpose.msra.mxu0 0
        %709 = vmatprep.subr.bf16.mxu0 0
        %710 = vmatpush1.bf16.xpose.msra.mxu0 0
        %711 = vmatprep.subr.bf16.mxu0 0
        %712 = vmatpush1.bf16.xpose.msra.mxu0 %v695
        %713 = vmatprep.subr.bf16.mxu0 0
        %714 = vmatpush2.bf16.xpose.msra.mxu0 0
        %715 = vmatprep.subr.bf16.mxu0 0
        %716 = vmatpush2.bf16.xpose.msra.mxu0 0
        %717 = vmatprep.subr.bf16.mxu0 0
        %718 = vmatpush2.bf16.xpose.msra.mxu0 0
        %719 = vmatprep.subr.bf16.mxu0 0
        %720 = vmatpush2.bf16.xpose.msra.mxu0 0
        %721 = vmatprep.subr.bf16.mxu0 0
        %722 = vmatpush2.bf16.xpose.msra.mxu0 0
        %723 = vmatprep.subr.bf16.mxu0 0
        %724 = vmatpush2.bf16.xpose.msra.mxu0 0
        %725 = vmatprep.subr.bf16.mxu0 0
        %726 = vmatpush2.bf16.xpose.msra.mxu0 0
        %727 = vmatprep.subr.bf16.mxu0 0
        %728 = vmatpush2.bf16.xpose.msra.mxu0 0
        %729 = vmatprep.mubr.bf16.mxu0 0
        %730 = vmatmul.mubr.bf16.gmra.mxu0 %v692
        %v731 = vpop.f32.mrf.mxu0
        %v732 = vadd.f32 0.0, %v731
        %v733 = vpop.f32.mrf.mxu0
        %v734 = vpop.f32.mrf.mxu0
        %v735 = vpop.f32.mrf.mxu0
        %736 = vdwg.mxu0
        %v737 = vsel %vm644, %v686, -inf
        %738 = vmax.xlane.f32.xlu0 %v737
        %v739 = vpop.xlane.xlu0 %738
        %v740 = vsel %vm644, %v732, -inf
        %741 = vmax.xlane.f32.xlu0 %v740
        %v742 = vpop.xlane.xlu0 %741
        %v743 = vsub.f32 %v686, %v739
        %v744 = vsub.f32 %v732, %v742
        %v745 = vmul.f32 %v743, 1.442695
        %v746 = vpow.pop %v745
        %v747 = vmul.f32 %v744, 1.442695
        %v748 = vpow.pop %v747
        %v749 = vsel %vm644, %v746, 0.0
        %750 = vadd.xlane.f32.xlu0 %v749
        %v751 = vpop.xlane.xlu0 %750
        %v752 = vsel %vm644, %v748, 0.0
        %753 = vadd.xlane.f32.xlu0 %v752
        %v754 = vpop.xlane.xlu0 %753
        %v755 = vrcp.pop %v751
        %v756 = vrcp.pop %v754
        %v757 = vmul.f32 %v746, %v755
        %v758 = vmul.f32 %v748, %v756
        %v759 = vpack.c.bf16 %v757, %v757
        %v760 = vpack.c.bf16 %v758, %v758
        %vm761 = vcmask 60416
        %762 = vst.msk [vmem:[%s411] sm:$0xf] %vm761, %v759
        %763 = vst.msk [vmem:[%s411 + $0x4] sm:$0xf] %vm761, %v760
        %v765 = vsel %vm644, %v759, 0
        %vm767 = vcmask 1043456
        %v769 = vsel %vm767, %v642, 0
        %771 = vmatprep.subr.bf16.mxu0 0
        %772 = vmatpush1.bf16.msra.mxu0 0
        %773 = vmatprep.subr.bf16.mxu0 0
        %774 = vmatpush1.bf16.msra.mxu0 0
        %775 = vmatprep.subr.bf16.mxu0 0
        %776 = vmatpush1.bf16.msra.mxu0 0
        %777 = vmatprep.subr.bf16.mxu0 0
        %778 = vmatpush1.bf16.msra.mxu0 0
        %779 = vmatprep.subr.bf16.mxu0 0
        %780 = vmatpush1.bf16.msra.mxu0 0
        %781 = vmatprep.subr.bf16.mxu0 0
        %782 = vmatpush1.bf16.msra.mxu0 0
        %783 = vmatprep.subr.bf16.mxu0 0
        %784 = vmatpush1.bf16.msra.mxu0 0
        %785 = vmatprep.subr.bf16.mxu0 0
        %786 = vmatpush1.bf16.msra.mxu0 %v769
        %787 = vmatprep.subr.bf16.mxu0 0
        %788 = vmatpush2.bf16.msra.mxu0 0
        %789 = vmatprep.subr.bf16.mxu0 0
        %790 = vmatpush2.bf16.msra.mxu0 0
        %791 = vmatprep.subr.bf16.mxu0 0
        %792 = vmatpush2.bf16.msra.mxu0 0
        %793 = vmatprep.subr.bf16.mxu0 0
        %794 = vmatpush2.bf16.msra.mxu0 0
        %795 = vmatprep.subr.bf16.mxu0 0
        %796 = vmatpush2.bf16.msra.mxu0 0
        %797 = vmatprep.subr.bf16.mxu0 0
        %798 = vmatpush2.bf16.msra.mxu0 0
        %799 = vmatprep.subr.bf16.mxu0 0
        %800 = vmatpush2.bf16.msra.mxu0 0
        %801 = vmatprep.subr.bf16.mxu0 0
        %802 = vmatpush2.bf16.msra.mxu0 0
        %803 = vmatprep.mubr.bf16.mxu0 0
        %804 = vmatmul.mubr.bf16.gmra.mxu0 %v765
        %v805 = vpop.f32.mrf.mxu0
        %v806 = vadd.f32 0.0, %v805
        %v807 = vpop.f32.mrf.mxu0
        %v808 = vpop.f32.mrf.mxu0
        %v809 = vpop.f32.mrf.mxu0
        %810 = vdwg.mxu0
        %v812 = vsel %vm644, %v760, 0
        %v815 = vsel %vm767, %v643, 0
        %817 = vmatprep.subr.bf16.mxu0 0
        %818 = vmatpush1.bf16.msra.mxu0 0
        %819 = vmatprep.subr.bf16.mxu0 0
        %820 = vmatpush1.bf16.msra.mxu0 0
        %821 = vmatprep.subr.bf16.mxu0 0
        %822 = vmatpush1.bf16.msra.mxu0 0
        %823 = vmatprep.subr.bf16.mxu0 0
        %824 = vmatpush1.bf16.msra.mxu0 0
        %825 = vmatprep.subr.bf16.mxu0 0
        %826 = vmatpush1.bf16.msra.mxu0 0
        %827 = vmatprep.subr.bf16.mxu0 0
        %828 = vmatpush1.bf16.msra.mxu0 0
        %829 = vmatprep.subr.bf16.mxu0 0
        %830 = vmatpush1.bf16.msra.mxu0 0
        %831 = vmatprep.subr.bf16.mxu0 0
        %832 = vmatpush1.bf16.msra.mxu0 %v815
        %833 = vmatprep.subr.bf16.mxu0 0
        %834 = vmatpush2.bf16.msra.mxu0 0
        %835 = vmatprep.subr.bf16.mxu0 0
        %836 = vmatpush2.bf16.msra.mxu0 0
        %837 = vmatprep.subr.bf16.mxu0 0
        %838 = vmatpush2.bf16.msra.mxu0 0
        %839 = vmatprep.subr.bf16.mxu0 0
        %840 = vmatpush2.bf16.msra.mxu0 0
        %841 = vmatprep.subr.bf16.mxu0 0
        %842 = vmatpush2.bf16.msra.mxu0 0
        %843 = vmatprep.subr.bf16.mxu0 0
        %844 = vmatpush2.bf16.msra.mxu0 0
        %845 = vmatprep.subr.bf16.mxu0 0
        %846 = vmatpush2.bf16.msra.mxu0 0
        %847 = vmatprep.subr.bf16.mxu0 0
        %848 = vmatpush2.bf16.msra.mxu0 0
        %849 = vmatprep.mubr.bf16.mxu0 0
        %850 = vmatmul.mubr.bf16.gmra.mxu0 %v812
        %v851 = vpop.f32.mrf.mxu0
        %v852 = vadd.f32 0.0, %v851
        %v853 = vpop.f32.mrf.mxu0
        %v854 = vpop.f32.mrf.mxu0
        %v855 = vpop.f32.mrf.mxu0
        %856 = vdwg.mxu0
        %858 = vrot.lane.b32.xlu0 %v852, 8
        %v859 = vpop.permute.xlu0 %858
        %v861 = vsel %vm644, %v806, %v859
        %v862 = vpack.c.bf16 %v861, %v861
        %v863 = vld [vmem:[%s6] sm:$0xf]
        %v864 = vld [vmem:[%s6 + $0x4] sm:$0xf]
        %v867 = vunpack.c.l.b16 %v863
        %v868 = vunpack.c.l.b16 %v864
        %v869 = vpack.c.b16 %v868, %v867
        %vm871 = vcmask 130048
        %v873 = vsel %vm871, %v862, 0
        %875 = vmatprep.subr.bf16.mxu0 0
        %876 = vmatpush1.bf16.msra.mxu0 0
        %877 = vmatprep.subr.bf16.mxu0 0
        %878 = vmatpush1.bf16.msra.mxu0 0
        %879 = vmatprep.subr.bf16.mxu0 0
        %880 = vmatpush1.bf16.msra.mxu0 0
        %881 = vmatprep.subr.bf16.mxu0 0
        %882 = vmatpush1.bf16.msra.mxu0 0
        %883 = vmatprep.subr.bf16.mxu0 0
        %884 = vmatpush1.bf16.msra.mxu0 0
        %885 = vmatprep.subr.bf16.mxu0 0
        %886 = vmatpush1.bf16.msra.mxu0 0
        %887 = vmatprep.subr.bf16.mxu0 0
        %888 = vmatpush1.bf16.msra.mxu0 0
        %889 = vmatprep.subr.bf16.mxu0 0
        %890 = vmatpush1.bf16.msra.mxu0 %v869
        %891 = vmatprep.subr.bf16.mxu0 0
        %892 = vmatpush2.bf16.msra.mxu0 0
        %893 = vmatprep.subr.bf16.mxu0 0
        %894 = vmatpush2.bf16.msra.mxu0 0
        %895 = vmatprep.subr.bf16.mxu0 0
        %896 = vmatpush2.bf16.msra.mxu0 0
        %897 = vmatprep.subr.bf16.mxu0 0
        %898 = vmatpush2.bf16.msra.mxu0 0
        %899 = vmatprep.subr.bf16.mxu0 0
        %900 = vmatpush2.bf16.msra.mxu0 0
        %901 = vmatprep.subr.bf16.mxu0 0
        %902 = vmatpush2.bf16.msra.mxu0 0
        %903 = vmatprep.subr.bf16.mxu0 0
        %904 = vmatpush2.bf16.msra.mxu0 0
        %905 = vmatprep.subr.bf16.mxu0 0
        %906 = vmatpush2.bf16.msra.mxu0 0
        %907 = vmatprep.mubr.bf16.mxu0 0
        %908 = vmatmul.mubr.bf16.gmra.mxu0 %v873
        %v909 = vpop.f32.mrf.mxu0
        %v910 = vadd.f32 %v574, %v909
        %v911 = vpop.f32.mrf.mxu0
        %v912 = vpop.f32.mrf.mxu0
        %v913 = vpop.f32.mrf.mxu0
        %914 = vdwg.mxu0
        %v915 = vsel %vm592, %v910, 0.0
        %916 = vadd.xlane.f32.xlu0 %v915
        %v917 = vpop.xlane.xlu0 %916
        %v918 = vmul.f32 %v910, %v910
        %v919 = vsel %vm592, %v918, 0.0
        %920 = vadd.xlane.f32.xlu0 %v919
        %v921 = vpop.xlane.xlu0 %920
        %v922 = vmul.f32 %v917, 0.03125
        %v923 = vmul.f32 %v921, 0.03125
        %v924 = vmul.f32 %v922, %v922
        %v925 = vsub.f32 %v923, %v924
        %v926 = vmax.f32 %v925, 0.0
        %v927 = vsub.f32 %v910, %v922
        %v928 = vadd.f32 %v926, 1e-05
        %v929 = vrsqrt.pop %v928
        %v930 = vmul.f32 %v927, %v929
        %v931 = vld [vmem:[%s7] sm:$0x1]
        %v933 = vlaneseq
        %v934 = vshrl.u32 %v933, 7
        %v935 = vsub.s32 0, %v934
        %v936 = vrot.slane %v931, %v935
        %v938 = vmul.f32 %v930, %v936
        %v939 = vld [vmem:[%s8] sm:$0x1]
        %v941 = vlaneseq
        %v942 = vshrl.u32 %v941, 7
        %v943 = vsub.s32 0, %v942
        %v944 = vrot.slane %v939, %v943
        %v946 = vadd.f32 %v938, %v944
        %947 = vst.msk [vmem:[%s404] sm:$0xff] %vm592, %v946
        %s948 = sand.u32 %s256, 1
        %s949 = scalar_lea.sflag [#allocation5], %s948
        %s950 = sand.u32 %s256, 1
        %s951 = smul.addr %s950, 8
        %s952 = scalar_lea.vmem [#allocation4], %s951
        %s953 = sand.u32 %s284, 1
        %s954 = scalar_lea.sflag [#allocation7], %s953
        %s955 = sand.u32 %s284, 1
        %s956 = smul.addr %s955, 8
        %s957 = scalar_lea.vmem [#allocation6], %s956
        // Predicated region
        $region61: #{tpu_custom_call.1} parent=55 // pred_check
          %p958 = pneg %p266
        $region62: #{tpu_custom_call.1} parent=55 // pred_check_branch
          %960 = sbr.rel (%p958) target = $region64
        $region63: #{tpu_custom_call.1} parent=55 // pred_region
          %s962 = ssub.s32 128, 128
          %963 = vsyncadd %s949, %s962
          %s964 = sadd.s32 %s33, %s32
          %s965 = smul.addr %s964, 128
          %s966 = scalar_lea.hbm %s9, %s965
          %s968 = sshll.u32 %s952, 4
          %s969 = int_to_ptr.vmem [resolvable:$true] %s968
          %971 = dma.vmem_to_hbm [thread:$0]  %s969, 128, %s966, %s949
        $region64: #{tpu_custom_call.1} parent=55 // pred_fallthru
          _
        // Predicated region
        $region65: #{tpu_custom_call.1} parent=55 // pred_check
          %p972 = pneg %p294
        $region66: #{tpu_custom_call.1} parent=55 // pred_check_branch
          %974 = sbr.rel (%p972) target = $region68
        $region67: #{tpu_custom_call.1} parent=55 // pred_region
          %s976 = ssub.s32 128, 128
          %977 = vsyncadd %s954, %s976
          %s978 = sadd.s32 %s33, %s32
          %s979 = smul.addr %s978, 64
          %s980 = scalar_lea.hbm %s10, %s979
          %s981 = sshll.u32 %s957, 4
          %s982 = int_to_ptr.vmem [resolvable:$true] %s981
          %987 = dma.vmem_to_hbm [thread:$0]  %s982, 128, %s980, %s954, 64, 128, 4
        $region68: #{tpu_custom_call.1} parent=55 // pred_fallthru
          _
      $region56: #{tpu_custom_call.1} parent=5 // pred_fallthru
        _
      %p988 = scmp.le.s32.totalorder 2, %s23
      // Predicated region
      $region69: #{tpu_custom_call.1} parent=5 // pred_check
        %p989 = pneg %p988
      $region70: #{tpu_custom_call.1} parent=5 // pred_check_branch
        %991 = sbr.rel (%p989) target = $region72
      $region71: #{tpu_custom_call.1} parent=5 // pred_region
        %s992 = ssub.s32 %s23, 2
        // Predicated region
        $region73: #{tpu_custom_call.1} parent=71 // pred_check
          %p993 = pneg %p272
        $region74: #{tpu_custom_call.1} parent=71 // pred_check_branch
          %995 = sbr.rel (%p993) target = $region76
        $region75: #{tpu_custom_call.1} parent=71 // pred_region
          %s996 = sand.u32 %s257, 1
          %s997 = scalar_lea.sflag [#allocation5], %s996
          %s998 = sand.u32 %s257, 1
          %s999 = smul.addr %s998, 8
          %s1000 = scalar_lea.vmem [#allocation4], %s999
          %1001 = dma.done %s997, 128
        $region76: #{tpu_custom_call.1} parent=71 // pred_fallthru
          _
        // Predicated region
        $region77: #{tpu_custom_call.1} parent=71 // pred_check
          %p1002 = pneg %p300
        $region78: #{tpu_custom_call.1} parent=71 // pred_check_branch
          %1004 = sbr.rel (%p1002) target = $region80
        $region79: #{tpu_custom_call.1} parent=71 // pred_region
          %s1005 = sand.u32 %s285, 1
          %s1006 = scalar_lea.sflag [#allocation7], %s1005
          %s1007 = sand.u32 %s285, 1
          %s1008 = smul.addr %s1007, 8
          %s1009 = scalar_lea.vmem [#allocation6], %s1008
          %1010 = dma.done %s1006, 128
        $region80: #{tpu_custom_call.1} parent=71 // pred_fallthru
          _
      $region72: #{tpu_custom_call.1} parent=5 // pred_fallthru
        _
    $region6: #{tpu_custom_call.1} parent=1 // loop_footer
      %s27 = sadd.s32 1, %s23
    $region7: #{tpu_custom_call.1} parent=1 // loop_footer_branch
      %22 = sbr.rel target = $region3
    $region8: #{tpu_custom_call.1} parent=1 // loop_exit
      _
    %1011 = vsyncpa [#allocation5], 1
    %s1012 = scalar_lea.sflag [#allocation5], 1
    %1013 = vsyncpa %s1012, 1
    %1014 = vsyncpa [#allocation7], 1
    %s1015 = scalar_lea.sflag [#allocation7], 1
    %1016 = vsyncpa %s1015, 1

</llo_original>
